<compile_context>
chip_gen: v5e
topology: v5e:2x2
jax: 0.10.0
libtpu: 0.0.40
codegen_flags: <defaults>
</compile_context>

<pallas_src>
import jax
import jax.numpy as jnp
from jax.experimental import pallas as pl
from jax.experimental.pallas import tpu as pltpu

LANE = 128          # TPU lane width
BF16_SUBLANE = 16   # bf16 sublane-packing granularity


def _round_up(n, m):
    return ((n + m - 1) // m) * m


def mlp_kernel(x_ref, w1_ref, b1_ref, w2_ref, b2_ref, w3_ref, b3_ref, o_ref):
    # Layer 1: x read as f32, cast to bf16 on the VPU, MXU matmul with f32
    # accumulation; bias + ReLU stay on the f32 VPU path (works on v5e too).
    x = x_ref[...].astype(jnp.bfloat16)
    h1 = jnp.dot(x, w1_ref[...], preferred_element_type=jnp.float32)
    h1 = jnp.maximum(h1 + b1_ref[...], 0.0)
    # Layer 2.
    h2 = jnp.dot(h1.astype(jnp.bfloat16), w2_ref[...],
                 preferred_element_type=jnp.float32)
    h2 = jnp.maximum(h2 + b2_ref[...], 0.0)
    # Output layer (no activation). Lane-dense padded block, bf16 store.
    out = jnp.dot(h2.astype(jnp.bfloat16), w3_ref[...],
                  preferred_element_type=jnp.float32)
    o_ref[...] = (out + b3_ref[...]).astype(o_ref.dtype)


def mnist_nn_forward(x, w1, b1, w2, b2, w3, b3, *, tile_b=None,
                     vmem_budget_bytes=40 << 20):
    """relu(x@W1+b1) -> relu(.@W2+b2) -> .@W3+b3, fused in one pallas_call.

    x:  [B, D_in] f32
    w1: [D_in, H1], b1: [H1]
    w2: [H1, H2],  b2: [H2]
    w3: [H2, D_out], b3: [D_out]
    returns [B, D_out] f32
    """
    B, D_in = x.shape
    H1 = w1.shape[1]
    H2 = w2.shape[1]
    D_out = w3.shape[1]

    # --- Lane-dense zero padding of the narrow dims (H2, D_out -> 128). Zero
    #     columns/rows are exact no-ops (ReLU(0+0)=0, zero rows of W3 add
    #     nothing); padding is sliced off on return. ---
    H2p = _round_up(max(H2, LANE), LANE)
    Dop = _round_up(max(D_out, LANE), LANE)
    w1b = w1.astype(jnp.bfloat16)
    w2b = jnp.zeros((H1, H2p), jnp.bfloat16).at[:, :H2].set(
        w2.astype(jnp.bfloat16))
    w3b = jnp.zeros((H2p, Dop), jnp.bfloat16).at[:H2, :D_out].set(
        w3.astype(jnp.bfloat16))
    b1r = b1.reshape(1, H1).astype(jnp.float32)
    b2p = jnp.zeros((1, H2p), jnp.float32).at[:, :H2].set(b2)
    b3p = jnp.zeros((1, Dop), jnp.float32).at[:, :D_out].set(b3)

    # --- Batch tile selection ---------------------------------------------
    # Per-row VMEM bytes: double-buffered f32 x tile + double-buffered bf16
    # out tile + in-kernel f32/bf16 intermediates (h1, h2, out).
    row_bytes = (2 * D_in * 4 + 2 * Dop * 2
                 + H1 * (4 + 2) + H2p * (4 + 2) + Dop * 4)
    resident_bytes = ((w1b.size + w2b.size + w3b.size) * 2
                      + (b1r.size + b2p.size + b3p.size) * 4)
    budget_rows = max(BF16_SUBLANE,
                      (vmem_budget_bytes - resident_bytes) // row_bytes)

    if tile_b is None:
        tile_b = 4096                       # amortize step overhead / weight reuse
    tile_b = min(tile_b, budget_rows)       # stay inside the VMEM budget
    # Keep >= 2 grid steps when possible so both v7x TensorCores get work.
    tile_b = min(tile_b, _round_up(pl.cdiv(B, 2), BF16_SUBLANE))
    # Don't overshoot small batches.
    tile_b = min(tile_b, _round_up(B, BF16_SUBLANE))
    # Granularity: multiples of 256 for big tiles (full MXU M passes), else
    # the bf16 sublane packing granularity of 16.
    if tile_b >= 256:
        tile_b = (tile_b // 256) * 256
    else:
        tile_b = max(BF16_SUBLANE, (tile_b // BF16_SUBLANE) * BF16_SUBLANE)

    Bp = _round_up(B, tile_b)
    xp = x if Bp == B else jnp.pad(x, ((0, Bp - B), (0, 0)))
    grid = (Bp // tile_b,)

    # Weight/bias blocks: full array, constant block index -> VMEM-resident
    # (fetched once, no re-DMA per grid step).
    resident = lambda shape: pl.BlockSpec(shape, lambda i: (0,) * len(shape))

    flops = 2 * Bp * (D_in * H1 + H1 * H2p + H2p * Dop)
    bytes_accessed = (Bp * D_in * 4                           # x read (f32)
                      + (w1b.size + w2b.size + w3b.size) * 2  # bf16 weights
                      + (b1r.size + b2p.size + b3p.size) * 4  # f32 biases
                      + Bp * Dop * 2)                         # bf16 output

    # Scoped-VMEM limit: defaults are 16 MiB (v5e) / 32 MiB (v6e, v7x); raise
    # it for the large tiles while staying under v7x's 64 MiB physical VMEM.
    vmem_needed = resident_bytes + tile_b * row_bytes
    vmem_limit = int(min(max(32 << 20, vmem_needed + (8 << 20)), 56 << 20))

    out = pl.pallas_call(
        mlp_kernel,
        out_shape=jax.ShapeDtypeStruct((Bp, Dop), jnp.bfloat16),
        grid=grid,
        in_specs=[
            pl.BlockSpec((tile_b, D_in), lambda i: (i, 0)),   # x tile (pipelined)
            resident((D_in, H1)),                             # w1
            resident((1, H1)),                                # b1
            resident((H1, H2p)),                              # w2
            resident((1, H2p)),                               # b2
            resident((H2p, Dop)),                             # w3
            resident((1, Dop)),                               # b3
        ],
        out_specs=pl.BlockSpec((tile_b, Dop), lambda i: (i, 0)),
        compiler_params=pltpu.CompilerParams(
            dimension_semantics=("parallel",),
            vmem_limit_bytes=vmem_limit),
        cost_estimate=pl.CostEstimate(
            flops=flops, transcendentals=0, bytes_accessed=bytes_accessed),
    )(xp, w1b, b1r, w2b, b2p, w3b, b3p)

    return out[:B, :D_out].astype(jnp.float32)


def init_linear(key, in_dim, out_dim):
    """PyTorch nn.Linear default init: U(-1/sqrt(in), 1/sqrt(in))."""
    kw, kb = jax.random.split(key)
    bound = 1.0 / jnp.sqrt(jnp.float32(in_dim))
    # PyTorch stores weight as [out, in]; return it transposed to [in, out].
    w = jax.random.uniform(kw, (out_dim, in_dim), jnp.float32, -bound, bound).T
    b = jax.random.uniform(kb, (out_dim,), jnp.float32, -bound, bound)
    return w, b


if __name__ == "__main__":
    # Small shapes consistent with the module's forward (flat feature vectors).
    # batch=512 -> auto tile_b=256 -> a 2-step batch grid (exercises pipelining
    # and the megacore split).
    batch = 512
    input_dim, hidden1_dim, hidden2_dim, output_dim = 256, 128, 64, 16

    key = jax.random.PRNGKey(0)
    kx, k1, k2, k3 = jax.random.split(key, 4)

    x = jax.random.normal(kx, (batch, input_dim), jnp.float32)
    w1, b1 = init_linear(k1, input_dim, hidden1_dim)
    w2, b2 = init_linear(k2, hidden1_dim, hidden2_dim)
    w3, b3 = init_linear(k3, hidden2_dim, output_dim)

    fwd = jax.jit(mnist_nn_forward)
    out = fwd(x, w1, b1, w2, b2, w3, b3)
    jax.block_until_ready(out)

    # Reference with the same numerics (bf16 MXU inputs, f32 accumulation,
    # one bf16 rounding of the final output) so the check isolates kernel
    # correctness rather than dtype policy.
    def ref_fwd(x, w1, b1, w2, b2, w3, b3):
        bf, f32 = jnp.bfloat16, jnp.float32
        h1 = jnp.maximum(
            jnp.dot(x.astype(bf), w1.astype(bf), preferred_element_type=f32) + b1, 0.0)
        h2 = jnp.maximum(
            jnp.dot(h1.astype(bf), w2.astype(bf), preferred_element_type=f32) + b2, 0.0)
        y = jnp.dot(h2.astype(bf), w3.astype(bf), preferred_element_type=f32) + b3
        return y.astype(bf).astype(f32)

    ref = ref_fwd(x, w1, b1, w2, b2, w3, b3)
    assert out.shape == (batch, output_dim)
    assert out.dtype == jnp.float32
    max_err = float(jnp.max(jnp.abs(out - ref)))
    assert jnp.allclose(out, ref, atol=1e-2, rtol=1e-2), max_err

    print("KERNEL_OK")
</pallas_src>

<mosaic_0001>
module attributes {stable_mosaic.version = 11 : i64} {
  func.func @mlp_kernel(%arg0: i32, %arg1: memref<256x256xf32, #tpu.memory_space<vmem>>, %arg2: memref<256x128xbf16, #tpu.memory_space<vmem>>, %arg3: memref<1x128xf32, #tpu.memory_space<vmem>>, %arg4: memref<128x128xbf16, #tpu.memory_space<vmem>>, %arg5: memref<1x128xf32, #tpu.memory_space<vmem>>, %arg6: memref<128x128xbf16, #tpu.memory_space<vmem>>, %arg7: memref<1x128xf32, #tpu.memory_space<vmem>>, %arg8: memref<256x128xbf16, #tpu.memory_space<vmem>>) attributes {dimension_semantics = [#tpu.dimension_semantics<parallel>], iteration_bounds = array<i64: 2>, scalar_prefetch = 0 : i64, scratch_operands = 0 : i64, tpu.core_type = #tpu.core_type<tc>, window_params = [{transform_indices = @transform_0, window_bounds = array<i64: 256, 256>}, {pipeline_mode = #tpu.pipeline_mode<synchronous>, transform_indices = @transform_1, window_bounds = array<i64: 256, 128>}, {pipeline_mode = #tpu.pipeline_mode<synchronous>, transform_indices = @transform_2, window_bounds = array<i64: 1, 128>}, {pipeline_mode = #tpu.pipeline_mode<synchronous>, transform_indices = @transform_3, window_bounds = array<i64: 128, 128>}, {pipeline_mode = #tpu.pipeline_mode<synchronous>, transform_indices = @transform_4, window_bounds = array<i64: 1, 128>}, {pipeline_mode = #tpu.pipeline_mode<synchronous>, transform_indices = @transform_5, window_bounds = array<i64: 128, 128>}, {pipeline_mode = #tpu.pipeline_mode<synchronous>, transform_indices = @transform_6, window_bounds = array<i64: 1, 128>}, {transform_indices = @transform_7, window_bounds = array<i64: 256, 128>}]} {
    %c0 = arith.constant 0 : index
    %c0_0 = arith.constant 0 : index
    %0 = vector.load %arg1[%c0, %c0_0] : memref<256x256xf32, #tpu.memory_space<vmem>>, vector<256x256xf32>
    %1 = arith.truncf %0 : vector<256x256xf32> to vector<256x256xbf16>
    %c0_1 = arith.constant 0 : index
    %c0_2 = arith.constant 0 : index
    %2 = vector.load %arg2[%c0_1, %c0_2] : memref<256x128xbf16, #tpu.memory_space<vmem>>, vector<256x128xbf16>
    %cst = arith.constant dense<0.000000e+00> : vector<256x128xf32>
    %3 = tpu.matmul %1, %2, %cst {dimension_numbers = #tpu.dot_dimension_numbers<[1], [0], [0], [1], [0, 0, 1, 1], [], []>} : vector<256x256xbf16>, vector<256x128xbf16>, vector<256x128xf32> -> vector<256x128xf32>
    %c0_3 = arith.constant 0 : index
    %c0_4 = arith.constant 0 : index
    %4 = vector.load %arg3[%c0_3, %c0_4] : memref<1x128xf32, #tpu.memory_space<vmem>>, vector<1x128xf32>
    %5 = vector.broadcast %4 : vector<1x128xf32> to vector<256x128xf32>
    %6 = arith.addf %3, %5 : vector<256x128xf32>
    %cst_5 = arith.constant 0.000000e+00 : f32
    %7 = vector.broadcast %cst_5 : f32 to vector<256x128xf32>
    %8 = arith.maximumf %6, %7 : vector<256x128xf32>
    %9 = arith.truncf %8 : vector<256x128xf32> to vector<256x128xbf16>
    %c0_6 = arith.constant 0 : index
    %c0_7 = arith.constant 0 : index
    %10 = vector.load %arg4[%c0_6, %c0_7] : memref<128x128xbf16, #tpu.memory_space<vmem>>, vector<128x128xbf16>
    %cst_8 = arith.constant dense<0.000000e+00> : vector<256x128xf32>
    %11 = tpu.matmul %9, %10, %cst_8 {dimension_numbers = #tpu.dot_dimension_numbers<[1], [0], [0], [1], [0, 0, 1, 1], [], []>} : vector<256x128xbf16>, vector<128x128xbf16>, vector<256x128xf32> -> vector<256x128xf32>
    %c0_9 = arith.constant 0 : index
    %c0_10 = arith.constant 0 : index
    %12 = vector.load %arg5[%c0_9, %c0_10] : memref<1x128xf32, #tpu.memory_space<vmem>>, vector<1x128xf32>
    %13 = vector.broadcast %12 : vector<1x128xf32> to vector<256x128xf32>
    %14 = arith.addf %11, %13 : vector<256x128xf32>
    %cst_11 = arith.constant 0.000000e+00 : f32
    %15 = vector.broadcast %cst_11 : f32 to vector<256x128xf32>
    %16 = arith.maximumf %14, %15 : vector<256x128xf32>
    %17 = arith.truncf %16 : vector<256x128xf32> to vector<256x128xbf16>
    %c0_12 = arith.constant 0 : index
    %c0_13 = arith.constant 0 : index
    %18 = vector.load %arg6[%c0_12, %c0_13] : memref<128x128xbf16, #tpu.memory_space<vmem>>, vector<128x128xbf16>
    %cst_14 = arith.constant dense<0.000000e+00> : vector<256x128xf32>
    %19 = tpu.matmul %17, %18, %cst_14 {dimension_numbers = #tpu.dot_dimension_numbers<[1], [0], [0], [1], [0, 0, 1, 1], [], []>} : vector<256x128xbf16>, vector<128x128xbf16>, vector<256x128xf32> -> vector<256x128xf32>
    %c0_15 = arith.constant 0 : index
    %c0_16 = arith.constant 0 : index
    %20 = vector.load %arg7[%c0_15, %c0_16] : memref<1x128xf32, #tpu.memory_space<vmem>>, vector<1x128xf32>
    %21 = vector.broadcast %20 : vector<1x128xf32> to vector<256x128xf32>
    %22 = arith.addf %19, %21 : vector<256x128xf32>
    %23 = arith.truncf %22 : vector<256x128xf32> to vector<256x128xbf16>
    %c0_17 = arith.constant 0 : index
    %c0_18 = arith.constant 0 : index
    %24 = vector.load %arg8[%c0_17, %c0_18] : memref<256x128xbf16, #tpu.memory_space<vmem>>, vector<256x128xbf16>
    tpu.vector_store %arg8[%c0_17, %c0_18], %23 {strides = array<i32>} : memref<256x128xbf16, #tpu.memory_space<vmem>>, vector<256x128xbf16>,
    return
  }
  func.func @transform_0(%arg0: i32) -> (i32, i32) {
    %c0_i32 = arith.constant 0 : i32
    %c0_i32_0 = arith.constant 0 : i32
    return %arg0, %c0_i32 : i32, i32
  }
  func.func @transform_1(%arg0: i32) -> (i32, i32) {
    %c0_i32 = arith.constant 0 : i32
    %c0_i32_0 = arith.constant 0 : i32
    %c0_i32_1 = arith.constant 0 : i32
    return %c0_i32, %c0_i32_0 : i32, i32
  }
  func.func @transform_2(%arg0: i32) -> (i32, i32) {
    %c0_i32 = arith.constant 0 : i32
    %c0_i32_0 = arith.constant 0 : i32
    %c0_i32_1 = arith.constant 0 : i32
    return %c0_i32, %c0_i32_0 : i32, i32
  }
  func.func @transform_3(%arg0: i32) -> (i32, i32) {
    %c0_i32 = arith.constant 0 : i32
    %c0_i32_0 = arith.constant 0 : i32
    %c0_i32_1 = arith.constant 0 : i32
    return %c0_i32, %c0_i32_0 : i32, i32
  }
  func.func @transform_4(%arg0: i32) -> (i32, i32) {
    %c0_i32 = arith.constant 0 : i32
    %c0_i32_0 = arith.constant 0 : i32
    %c0_i32_1 = arith.constant 0 : i32
    return %c0_i32, %c0_i32_0 : i32, i32
  }
  func.func @transform_5(%arg0: i32) -> (i32, i32) {
    %c0_i32 = arith.constant 0 : i32
    %c0_i32_0 = arith.constant 0 : i32
    %c0_i32_1 = arith.constant 0 : i32
    return %c0_i32, %c0_i32_0 : i32, i32
  }
  func.func @transform_6(%arg0: i32) -> (i32, i32) {
    %c0_i32 = arith.constant 0 : i32
    %c0_i32_0 = arith.constant 0 : i32
    %c0_i32_1 = arith.constant 0 : i32
    return %c0_i32, %c0_i32_0 : i32, i32
  }
  func.func @transform_7(%arg0: i32) -> (i32, i32) {
    %c0_i32 = arith.constant 0 : i32
    %c0_i32_0 = arith.constant 0 : i32
    return %arg0, %c0_i32 : i32, i32
  }
}

</mosaic_0001>

<llo_original>
// kernel: mnist_nn_forward.1
$region0: #{mnist_nn_forward.1}
  #allocation0 [shape = 'u32[]', space=smem, size = 0x4, offset = 0x4, fixed_abs, tag = 'smem constant byte address 0x4 - core index']
  #allocation1 [shape = 'u32[72,128]{1,0:T(1,128)}', space=vmem, size = 0x9000, scoped, tag = 'internal scratch']
  %s0 = inlined_call_operand.hbm [shape: f32[512,256], index: 0, kind: input, shape index: {}]
  %s1 = inlined_call_operand.vmem [shape: bf16[256,128], index: 1, kind: input, shape index: {}]
  %s2 = inlined_call_operand.vmem [shape: f32[1,128], index: 2, kind: input, shape index: {}]
  %s3 = inlined_call_operand.vmem [shape: bf16[128,128], index: 3, kind: input, shape index: {}]
  %s4 = inlined_call_operand.vmem [shape: f32[1,128], index: 4, kind: input, shape index: {}]
  %s5 = inlined_call_operand.vmem [shape: bf16[128,128], index: 5, kind: input, shape index: {}]
  %s6 = inlined_call_operand.vmem [shape: f32[1,128], index: 6, kind: input, shape index: {}]
  %s7 = inlined_call_operand.vmem [shape: bf16[512,128], index: 7, kind: output, shape index: {}]
  %s8 = sld [smem:[#allocation0]]
  $region65: #{mnist_nn_forward.1} parent=0
    _
  %s10 = ssub.s32 1, %s8
  %s11 = scalar_select 0, %s10, %s8
  $region1: #{mnist_nn_forward.1} parent=0
    #allocation2 [shape = 'u8[524288]{0}', space=vmem, size = 0x80000, scoped, tag = 'input window, operand 0']
    #allocation3 [shape = 's32[2]{0}', space=sflag, size = 0x8, scoped, tag = 'scoped memory for mnist_nn_forward.1']
    %12 = vsyncpa [#allocation3], 0
    %s13 = scalar_lea.sflag [#allocation3], 1
    %14 = vsyncpa %s13, 0
    loop: start=0, step=1, limit=4
    $region2: #{mnist_nn_forward.1} parent=1 // loop_pre_header
      _
    $region3: #{mnist_nn_forward.1} parent=1 // loop_header
      %s16 = sphi 0, %s20
      %p17 = scmp.ge.s32.totalorder %s16, 4
      %s26 = sphi 0, %s28
      %s29 = sphi 0, %s26
      %s30 = sphi 0, %s29
      %s46 = sphi 0, %s30
      %s50 = sphi 0, %s50
      %s52 = sphi 0, %s50
      %s53 = sphi 0, %s52
      %s67 = sphi 0, %s53
      %s71 = sphi 0, %s71
      %s73 = sphi 0, %s71
      %s74 = sphi 0, %s73
      %s88 = sphi 0, %s74
      %s92 = sphi 0, %s92
      %s94 = sphi 0, %s92
      %s95 = sphi 0, %s94
      %s109 = sphi 0, %s95
      %s113 = sphi 0, %s113
      %s115 = sphi 0, %s113
      %s116 = sphi 0, %s115
      %s130 = sphi 0, %s116
      %s134 = sphi 0, %s134
      %s136 = sphi 0, %s134
      %s137 = sphi 0, %s136
      %s151 = sphi 0, %s137
      %s155 = sphi 0, %s155
      %s157 = sphi 0, %s155
      %s158 = sphi 0, %s157
      %s172 = sphi 0, %s158
      %s178 = sphi 0, %s180
      %s181 = sphi 0, %s178
      %s182 = sphi 0, %s181
      %s198 = sphi 0, %s182
    $region4: #{mnist_nn_forward.1} parent=1 // loop_header_branch
      %19 = sbr.rel (%p17) target = $region8
    $region5: #{mnist_nn_forward.1} parent=1 // loop_body
      %s21 = ssub.s32 %s16, 1
      %s22 = ssub.s32 %s16, 2
      %s23 = sadd.s32 %s16, 1
      %s24 = ssub.s32 %s16, %s23
      %p25 = scmp.eq.s32.totalorder %s24, 0
      %s27 = sadd.s32 %s26, 1
      %s28 = scalar_select %p25, %s26, %s27
      %p31 = pneg %p25
      %p32 = scmp.eq.s32.totalorder %s16, 1
      %p33 = por %p31, %p32
      %p34 = scmp.ne.s32.totalorder %s26, %s29
      %p35 = scmp.eq.s32.totalorder %s16, 0
      %p36 = por %p34, %p35
      %p37 = scmp.ne.s32.totalorder %s26, %s29
      %p38 = scmp.eq.s32.totalorder %s21, 1
      %p39 = por %p37, %p38
      %p40 = scmp.ne.s32.totalorder %s29, %s30
      %p41 = scmp.eq.s32.totalorder %s21, 0
      %p42 = por %p40, %p41
      %p43 = scmp.ne.s32.totalorder %s29, %s30
      %p44 = scmp.eq.s32.totalorder %s22, 1
      %p45 = por %p43, %p44
      %p47 = scmp.ne.s32.totalorder %s30, %s46
      %p48 = scmp.eq.s32.totalorder %s22, 0
      %p49 = por %p47, %p48
      %s51 = sadd.s32 %s50, 1
      %p54 = scmp.eq.s32.totalorder %s16, 1
      %p55 = scmp.ne.s32.totalorder %s50, %s52
      %p56 = scmp.eq.s32.totalorder %s16, 0
      %p57 = por %p55, %p56
      %p58 = scmp.ne.s32.totalorder %s50, %s52
      %p59 = scmp.eq.s32.totalorder %s21, 1
      %p60 = por %p58, %p59
      %p61 = scmp.ne.s32.totalorder %s52, %s53
      %p62 = scmp.eq.s32.totalorder %s21, 0
      %p63 = por %p61, %p62
      %p64 = scmp.ne.s32.totalorder %s52, %s53
      %p65 = scmp.eq.s32.totalorder %s22, 1
      %p66 = por %p64, %p65
      %p68 = scmp.ne.s32.totalorder %s53, %s67
      %p69 = scmp.eq.s32.totalorder %s22, 0
      %p70 = por %p68, %p69
      %s72 = sadd.s32 %s71, 1
      %p75 = scmp.eq.s32.totalorder %s16, 1
      %p76 = scmp.ne.s32.totalorder %s71, %s73
      %p77 = scmp.eq.s32.totalorder %s16, 0
      %p78 = por %p76, %p77
      %p79 = scmp.ne.s32.totalorder %s71, %s73
      %p80 = scmp.eq.s32.totalorder %s21, 1
      %p81 = por %p79, %p80
      %p82 = scmp.ne.s32.totalorder %s73, %s74
      %p83 = scmp.eq.s32.totalorder %s21, 0
      %p84 = por %p82, %p83
      %p85 = scmp.ne.s32.totalorder %s73, %s74
      %p86 = scmp.eq.s32.totalorder %s22, 1
      %p87 = por %p85, %p86
      %p89 = scmp.ne.s32.totalorder %s74, %s88
      %p90 = scmp.eq.s32.totalorder %s22, 0
      %p91 = por %p89, %p90
      %s93 = sadd.s32 %s92, 1
      %p96 = scmp.eq.s32.totalorder %s16, 1
      %p97 = scmp.ne.s32.totalorder %s92, %s94
      %p98 = scmp.eq.s32.totalorder %s16, 0
      %p99 = por %p97, %p98
      %p100 = scmp.ne.s32.totalorder %s92, %s94
      %p101 = scmp.eq.s32.totalorder %s21, 1
      %p102 = por %p100, %p101
      %p103 = scmp.ne.s32.totalorder %s94, %s95
      %p104 = scmp.eq.s32.totalorder %s21, 0
      %p105 = por %p103, %p104
      %p106 = scmp.ne.s32.totalorder %s94, %s95
      %p107 = scmp.eq.s32.totalorder %s22, 1
      %p108 = por %p106, %p107
      %p110 = scmp.ne.s32.totalorder %s95, %s109
      %p111 = scmp.eq.s32.totalorder %s22, 0
      %p112 = por %p110, %p111
      %s114 = sadd.s32 %s113, 1
      %p117 = scmp.eq.s32.totalorder %s16, 1
      %p118 = scmp.ne.s32.totalorder %s113, %s115
      %p119 = scmp.eq.s32.totalorder %s16, 0
      %p120 = por %p118, %p119
      %p121 = scmp.ne.s32.totalorder %s113, %s115
      %p122 = scmp.eq.s32.totalorder %s21, 1
      %p123 = por %p121, %p122
      %p124 = scmp.ne.s32.totalorder %s115, %s116
      %p125 = scmp.eq.s32.totalorder %s21, 0
      %p126 = por %p124, %p125
      %p127 = scmp.ne.s32.totalorder %s115, %s116
      %p128 = scmp.eq.s32.totalorder %s22, 1
      %p129 = por %p127, %p128
      %p131 = scmp.ne.s32.totalorder %s116, %s130
      %p132 = scmp.eq.s32.totalorder %s22, 0
      %p133 = por %p131, %p132
      %s135 = sadd.s32 %s134, 1
      %p138 = scmp.eq.s32.totalorder %s16, 1
      %p139 = scmp.ne.s32.totalorder %s134, %s136
      %p140 = scmp.eq.s32.totalorder %s16, 0
      %p141 = por %p139, %p140
      %p142 = scmp.ne.s32.totalorder %s134, %s136
      %p143 = scmp.eq.s32.totalorder %s21, 1
      %p144 = por %p142, %p143
      %p145 = scmp.ne.s32.totalorder %s136, %s137
      %p146 = scmp.eq.s32.totalorder %s21, 0
      %p147 = por %p145, %p146
      %p148 = scmp.ne.s32.totalorder %s136, %s137
      %p149 = scmp.eq.s32.totalorder %s22, 1
      %p150 = por %p148, %p149
      %p152 = scmp.ne.s32.totalorder %s137, %s151
      %p153 = scmp.eq.s32.totalorder %s22, 0
      %p154 = por %p152, %p153
      %s156 = sadd.s32 %s155, 1
      %p159 = scmp.eq.s32.totalorder %s16, 1
      %p160 = scmp.ne.s32.totalorder %s155, %s157
      %p161 = scmp.eq.s32.totalorder %s16, 0
      %p162 = por %p160, %p161
      %p163 = scmp.ne.s32.totalorder %s155, %s157
      %p164 = scmp.eq.s32.totalorder %s21, 1
      %p165 = por %p163, %p164
      %p166 = scmp.ne.s32.totalorder %s157, %s158
      %p167 = scmp.eq.s32.totalorder %s21, 0
      %p168 = por %p166, %p167
      %p169 = scmp.ne.s32.totalorder %s157, %s158
      %p170 = scmp.eq.s32.totalorder %s22, 1
      %p171 = por %p169, %p170
      %p173 = scmp.ne.s32.totalorder %s158, %s172
      %p174 = scmp.eq.s32.totalorder %s22, 0
      %p175 = por %p173, %p174
      %s176 = ssub.s32 %s16, %s23
      %p177 = scmp.eq.s32.totalorder %s176, 0
      %s179 = sadd.s32 %s178, 1
      %s180 = scalar_select %p177, %s178, %s179
      %p183 = pneg %p177
      %p184 = scmp.eq.s32.totalorder %s16, 1
      %p185 = por %p183, %p184
      %p186 = scmp.ne.s32.totalorder %s178, %s181
      %p187 = scmp.eq.s32.totalorder %s16, 0
      %p188 = por %p186, %p187
      %p189 = scmp.ne.s32.totalorder %s178, %s181
      %p190 = scmp.eq.s32.totalorder %s21, 1
      %p191 = por %p189, %p190
      %p192 = scmp.ne.s32.totalorder %s181, %s182
      %p193 = scmp.eq.s32.totalorder %s21, 0
      %p194 = por %p192, %p193
      %p195 = scmp.ne.s32.totalorder %s181, %s182
      %p196 = scmp.eq.s32.totalorder %s22, 1
      %p197 = por %p195, %p196
      %p199 = scmp.ne.s32.totalorder %s182, %s198
      %p200 = scmp.eq.s32.totalorder %s22, 0
      %p201 = por %p199, %p200
      %p202 = scmp.le.s32.totalorder 1, %s16
      %p203 = scmp.lt.s32.totalorder %s16, 3
      %p204 = pnand %p202, %p203
      %p205 = pneg %p204
      // Predicated region
      $region9: #{mnist_nn_forward.1} parent=5 // pred_check
        _
      $region10: #{mnist_nn_forward.1} parent=5 // pred_check_branch
        %207 = sbr.rel (%p204) target = $region12
      $region11: #{mnist_nn_forward.1} parent=5 // pred_region
        %s208 = ssub.s32 %s16, 1
        // Predicated region
        $region13: #{mnist_nn_forward.1} parent=11 // pred_check
          %p209 = pneg %p63
        $region14: #{mnist_nn_forward.1} parent=11 // pred_check_branch
          %211 = sbr.rel (%p209) target = $region16
        $region15: #{mnist_nn_forward.1} parent=11 // pred_region
          _
        $region16: #{mnist_nn_forward.1} parent=11 // pred_fallthru
          _
        // Predicated region
        $region17: #{mnist_nn_forward.1} parent=11 // pred_check
          %p212 = pneg %p84
        $region18: #{mnist_nn_forward.1} parent=11 // pred_check_branch
          %214 = sbr.rel (%p212) target = $region20
        $region19: #{mnist_nn_forward.1} parent=11 // pred_region
          _
        $region20: #{mnist_nn_forward.1} parent=11 // pred_fallthru
          _
        // Predicated region
        $region21: #{mnist_nn_forward.1} parent=11 // pred_check
          %p215 = pneg %p105
        $region22: #{mnist_nn_forward.1} parent=11 // pred_check_branch
          %217 = sbr.rel (%p215) target = $region24
        $region23: #{mnist_nn_forward.1} parent=11 // pred_region
          _
        $region24: #{mnist_nn_forward.1} parent=11 // pred_fallthru
          _
        // Predicated region
        $region25: #{mnist_nn_forward.1} parent=11 // pred_check
          %p218 = pneg %p126
        $region26: #{mnist_nn_forward.1} parent=11 // pred_check_branch
          %220 = sbr.rel (%p218) target = $region28
        $region27: #{mnist_nn_forward.1} parent=11 // pred_region
          _
        $region28: #{mnist_nn_forward.1} parent=11 // pred_fallthru
          _
        // Predicated region
        $region29: #{mnist_nn_forward.1} parent=11 // pred_check
          %p221 = pneg %p147
        $region30: #{mnist_nn_forward.1} parent=11 // pred_check_branch
          %223 = sbr.rel (%p221) target = $region32
        $region31: #{mnist_nn_forward.1} parent=11 // pred_region
          _
        $region32: #{mnist_nn_forward.1} parent=11 // pred_fallthru
          _
        // Predicated region
        $region33: #{mnist_nn_forward.1} parent=11 // pred_check
          %p224 = pneg %p168
        $region34: #{mnist_nn_forward.1} parent=11 // pred_check_branch
          %226 = sbr.rel (%p224) target = $region36
        $region35: #{mnist_nn_forward.1} parent=11 // pred_region
          _
        $region36: #{mnist_nn_forward.1} parent=11 // pred_fallthru
          _
      $region12: #{mnist_nn_forward.1} parent=5 // pred_fallthru
        _
      %p227 = scmp.lt.s32.totalorder %s16, 2
      // Predicated region
      $region37: #{mnist_nn_forward.1} parent=5 // pred_check
        %p228 = pneg %p227
      $region38: #{mnist_nn_forward.1} parent=5 // pred_check_branch
        %230 = sbr.rel (%p228) target = $region40
      $region39: #{mnist_nn_forward.1} parent=5 // pred_region
        // Predicated region
        $region41: #{mnist_nn_forward.1} parent=39 // pred_check
          %p231 = pneg %p36
        $region42: #{mnist_nn_forward.1} parent=39 // pred_check_branch
          %233 = sbr.rel (%p231) target = $region44
        $region43: #{mnist_nn_forward.1} parent=39 // pred_region
          %s234 = sand.u32 %s26, 1
          %s235 = scalar_lea.sflag [#allocation3], %s234
          %s236 = sand.u32 %s26, 1
          %s237 = smul.addr %s236, 512
          %s238 = scalar_lea.vmem [#allocation2], %s237
          %s239 = smul.u32 32, %s16
          %241 = vsyncadd %s235, 0
          %s242 = smul.addr %s239, 2
          %s243 = smul.addr %s242, 8
          %s244 = scalar_lea.hbm %s0, %s243
          %s245 = sshll.u32 %s244, 4
          %s246 = int_to_ptr.hbm [resolvable:$true] %s245
          %s247 = sshll.u32 %s238, 4
          %s248 = int_to_ptr.vmem [resolvable:$true] %s247
          %253 = dma.hbm_to_vmem [thread:$0]  %s246, 8192, %s248, %s235, 256, 256, 16
        $region44: #{mnist_nn_forward.1} parent=39 // pred_fallthru
          _
      $region40: #{mnist_nn_forward.1} parent=5 // pred_fallthru
        _
      %p254 = scmp.le.s32.totalorder 1, %s16
      %p255 = scmp.lt.s32.totalorder %s16, 3
      %p256 = pnand %p254, %p255
      %p257 = pneg %p256
      // Predicated region
      $region45: #{mnist_nn_forward.1} parent=5 // pred_check
        _
      $region46: #{mnist_nn_forward.1} parent=5 // pred_check_branch
        %259 = sbr.rel (%p256) target = $region48
      $region47: #{mnist_nn_forward.1} parent=5 // pred_region
        %s260 = ssub.s32 %s16, 1
        %s261 = sand.u32 %s29, 1
        %s262 = scalar_lea.sflag [#allocation3], %s261
        %s263 = sand.u32 %s29, 1
        %s264 = smul.addr %s263, 512
        %s265 = scalar_lea.vmem [#allocation2], %s264
        // Predicated region
        $region49: #{mnist_nn_forward.1} parent=47 // pred_check
          %p266 = pneg %p42
        $region50: #{mnist_nn_forward.1} parent=47 // pred_check_branch
          %268 = sbr.rel (%p266) target = $region52
        $region51: #{mnist_nn_forward.1} parent=47 // pred_region
          %270 = dma.done %s262, 8192
        $region52: #{mnist_nn_forward.1} parent=47 // pred_fallthru
          _
        %s271 = sand.u32 %s29, 1
        %s272 = scalar_lea.sflag [#allocation3], %s271
        %s273 = sand.u32 %s29, 1
        %s274 = smul.addr %s273, 512
        %s275 = scalar_lea.vmem [#allocation2], %s274
        %p276 = pneg %p42
        %p277 = pneg %p39
        %p278 = pneg %p63
        %p279 = pneg %p60
        %p280 = pneg %p84
        %p281 = pneg %p81
        %p282 = pneg %p105
        %p283 = pneg %p102
        %p284 = pneg %p126
        %p285 = pneg %p123
        %p286 = pneg %p147
        %p287 = pneg %p144
        %p288 = pneg %p168
        %p289 = pneg %p165
        %p290 = pneg %p194
        %p291 = pneg %p191
        %s292 = smul.u32 32, %s21
        %p293 = scmp.lt.s32.totalorder %s292, 63
        %s294 = scalar_select %p293, %s292, 63
        %s295 = smul.addr %s294, 4
        %s296 = scalar_lea.vmem %s7, %s295
        %s297 = smul.u32 32, %s21
        %s298 = smul.u32 32, %s21
        %p299 = scmp.lt.s32.totalorder %s298, 63
        %s300 = scalar_select %p299, %s298, 63
        %s301 = smul.addr %s300, 4
        %s302 = scalar_lea.vmem %s7, %s301
        %s303 = smul.u32 32, %s21
        %v304 = vld [vmem:[%s265] sm:$0xff]
        %v305 = vld [vmem:[%s265 + $0x8] sm:$0xff]
        %v306 = vld [vmem:[%s265 + $0x10] sm:$0xff]
        %v307 = vld [vmem:[%s265 + $0x18] sm:$0xff]
        %v308 = vld [vmem:[%s265 + $0x20] sm:$0xff]
        %v309 = vld [vmem:[%s265 + $0x28] sm:$0xff]
        %v310 = vld [vmem:[%s265 + $0x30] sm:$0xff]
        %v311 = vld [vmem:[%s265 + $0x38] sm:$0xff]
        %v312 = vld [vmem:[%s265 + $0x40] sm:$0xff]
        %v313 = vld [vmem:[%s265 + $0x48] sm:$0xff]
        %v314 = vld [vmem:[%s265 + $0x50] sm:$0xff]
        %v315 = vld [vmem:[%s265 + $0x58] sm:$0xff]
        %v316 = vld [vmem:[%s265 + $0x60] sm:$0xff]
        %v317 = vld [vmem:[%s265 + $0x68] sm:$0xff]
        %v318 = vld [vmem:[%s265 + $0x70] sm:$0xff]
        %v319 = vld [vmem:[%s265 + $0x78] sm:$0xff]
        %v320 = vld [vmem:[%s265 + $0x80] sm:$0xff]
        %v321 = vld [vmem:[%s265 + $0x88] sm:$0xff]
        %v322 = vld [vmem:[%s265 + $0x90] sm:$0xff]
        %v323 = vld [vmem:[%s265 + $0x98] sm:$0xff]
        %v324 = vld [vmem:[%s265 + $0xa0] sm:$0xff]
        %v325 = vld [vmem:[%s265 + $0xa8] sm:$0xff]
        %v326 = vld [vmem:[%s265 + $0xb0] sm:$0xff]
        %v327 = vld [vmem:[%s265 + $0xb8] sm:$0xff]
        %v328 = vld [vmem:[%s265 + $0xc0] sm:$0xff]
        %v329 = vld [vmem:[%s265 + $0xc8] sm:$0xff]
        %v330 = vld [vmem:[%s265 + $0xd0] sm:$0xff]
        %v331 = vld [vmem:[%s265 + $0xd8] sm:$0xff]
        %v332 = vld [vmem:[%s265 + $0xe0] sm:$0xff]
        %v333 = vld [vmem:[%s265 + $0xe8] sm:$0xff]
        %v334 = vld [vmem:[%s265 + $0xf0] sm:$0xff]
        %v335 = vld [vmem:[%s265 + $0xf8] sm:$0xff]
        %v336 = vld [vmem:[%s265 + $0x100] sm:$0xff]
        %v337 = vld [vmem:[%s265 + $0x108] sm:$0xff]
        %v338 = vld [vmem:[%s265 + $0x110] sm:$0xff]
        %v339 = vld [vmem:[%s265 + $0x118] sm:$0xff]
        %v340 = vld [vmem:[%s265 + $0x120] sm:$0xff]
        %v341 = vld [vmem:[%s265 + $0x128] sm:$0xff]
        %v342 = vld [vmem:[%s265 + $0x130] sm:$0xff]
        %v343 = vld [vmem:[%s265 + $0x138] sm:$0xff]
        %v344 = vld [vmem:[%s265 + $0x140] sm:$0xff]
        %v345 = vld [vmem:[%s265 + $0x148] sm:$0xff]
        %v346 = vld [vmem:[%s265 + $0x150] sm:$0xff]
        %v347 = vld [vmem:[%s265 + $0x158] sm:$0xff]
        %v348 = vld [vmem:[%s265 + $0x160] sm:$0xff]
        %v349 = vld [vmem:[%s265 + $0x168] sm:$0xff]
        %v350 = vld [vmem:[%s265 + $0x170] sm:$0xff]
        %v351 = vld [vmem:[%s265 + $0x178] sm:$0xff]
        %v352 = vld [vmem:[%s265 + $0x180] sm:$0xff]
        %v353 = vld [vmem:[%s265 + $0x188] sm:$0xff]
        %v354 = vld [vmem:[%s265 + $0x190] sm:$0xff]
        %v355 = vld [vmem:[%s265 + $0x198] sm:$0xff]
        %v356 = vld [vmem:[%s265 + $0x1a0] sm:$0xff]
        %v357 = vld [vmem:[%s265 + $0x1a8] sm:$0xff]
        %v358 = vld [vmem:[%s265 + $0x1b0] sm:$0xff]
        %v359 = vld [vmem:[%s265 + $0x1b8] sm:$0xff]
        %v360 = vld [vmem:[%s265 + $0x1c0] sm:$0xff]
        %v361 = vld [vmem:[%s265 + $0x1c8] sm:$0xff]
        %v362 = vld [vmem:[%s265 + $0x1d0] sm:$0xff]
        %v363 = vld [vmem:[%s265 + $0x1d8] sm:$0xff]
        %v364 = vld [vmem:[%s265 + $0x1e0] sm:$0xff]
        %v365 = vld [vmem:[%s265 + $0x1e8] sm:$0xff]
        %v366 = vld [vmem:[%s265 + $0x1f0] sm:$0xff]
        %v367 = vld [vmem:[%s265 + $0x1f8] sm:$0xff]
        %v368 = vpack.c.bf16 %v306, %v304
        %v369 = vpack.c.bf16 %v307, %v305
        %v370 = vpack.c.bf16 %v310, %v308
        %v371 = vpack.c.bf16 %v311, %v309
        %v372 = vpack.c.bf16 %v314, %v312
        %v373 = vpack.c.bf16 %v315, %v313
        %v374 = vpack.c.bf16 %v318, %v316
        %v375 = vpack.c.bf16 %v319, %v317
        %v376 = vpack.c.bf16 %v322, %v320
        %v377 = vpack.c.bf16 %v323, %v321
        %v378 = vpack.c.bf16 %v326, %v324
        %v379 = vpack.c.bf16 %v327, %v325
        %v380 = vpack.c.bf16 %v330, %v328
        %v381 = vpack.c.bf16 %v331, %v329
        %v382 = vpack.c.bf16 %v334, %v332
        %v383 = vpack.c.bf16 %v335, %v333
        %v384 = vpack.c.bf16 %v338, %v336
        %v385 = vpack.c.bf16 %v339, %v337
        %v386 = vpack.c.bf16 %v342, %v340
        %v387 = vpack.c.bf16 %v343, %v341
        %v388 = vpack.c.bf16 %v346, %v344
        %v389 = vpack.c.bf16 %v347, %v345
        %v390 = vpack.c.bf16 %v350, %v348
        %v391 = vpack.c.bf16 %v351, %v349
        %v392 = vpack.c.bf16 %v354, %v352
        %v393 = vpack.c.bf16 %v355, %v353
        %v394 = vpack.c.bf16 %v358, %v356
        %v395 = vpack.c.bf16 %v359, %v357
        %v396 = vpack.c.bf16 %v362, %v360
        %v397 = vpack.c.bf16 %v363, %v361
        %v398 = vpack.c.bf16 %v366, %v364
        %v399 = vpack.c.bf16 %v367, %v365
        %v400 = vld [vmem:[%s1] sm:$0xf]
        %v401 = vld [vmem:[%s1 + $0x4] sm:$0xf]
        %v402 = vld [vmem:[%s1 + $0x8] sm:$0xf]
        %v403 = vld [vmem:[%s1 + $0xc] sm:$0xf]
        %v404 = vld [vmem:[%s1 + $0x10] sm:$0xf]
        %v405 = vld [vmem:[%s1 + $0x14] sm:$0xf]
        %v406 = vld [vmem:[%s1 + $0x18] sm:$0xf]
        %v407 = vld [vmem:[%s1 + $0x1c] sm:$0xf]
        %v408 = vld [vmem:[%s1 + $0x20] sm:$0xf]
        %v409 = vld [vmem:[%s1 + $0x24] sm:$0xf]
        %v410 = vld [vmem:[%s1 + $0x28] sm:$0xf]
        %v411 = vld [vmem:[%s1 + $0x2c] sm:$0xf]
        %v412 = vld [vmem:[%s1 + $0x30] sm:$0xf]
        %v413 = vld [vmem:[%s1 + $0x34] sm:$0xf]
        %v414 = vld [vmem:[%s1 + $0x38] sm:$0xf]
        %v415 = vld [vmem:[%s1 + $0x3c] sm:$0xf]
        %v416 = vld [vmem:[%s1 + $0x40] sm:$0xf]
        %v417 = vld [vmem:[%s1 + $0x44] sm:$0xf]
        %v418 = vld [vmem:[%s1 + $0x48] sm:$0xf]
        %v419 = vld [vmem:[%s1 + $0x4c] sm:$0xf]
        %v420 = vld [vmem:[%s1 + $0x50] sm:$0xf]
        %v421 = vld [vmem:[%s1 + $0x54] sm:$0xf]
        %v422 = vld [vmem:[%s1 + $0x58] sm:$0xf]
        %v423 = vld [vmem:[%s1 + $0x5c] sm:$0xf]
        %v424 = vld [vmem:[%s1 + $0x60] sm:$0xf]
        %v425 = vld [vmem:[%s1 + $0x64] sm:$0xf]
        %v426 = vld [vmem:[%s1 + $0x68] sm:$0xf]
        %v427 = vld [vmem:[%s1 + $0x6c] sm:$0xf]
        %v428 = vld [vmem:[%s1 + $0x70] sm:$0xf]
        %v429 = vld [vmem:[%s1 + $0x74] sm:$0xf]
        %v430 = vld [vmem:[%s1 + $0x78] sm:$0xf]
        %v431 = vld [vmem:[%s1 + $0x7c] sm:$0xf]
        %v432 = vld [vmem:[%s2] sm:$0x1]
        %v434 = vperm.slane %v432, 0
        %v468 = vunpack.c.l.b16 %v400
        %v469 = vunpack.c.l.b16 %v401
        %v470 = vunpack.c.l.b16 %v402
        %v471 = vunpack.c.l.b16 %v403
        %v472 = vunpack.c.l.b16 %v404
        %v473 = vunpack.c.l.b16 %v405
        %v474 = vunpack.c.l.b16 %v406
        %v475 = vunpack.c.l.b16 %v407
        %v476 = vunpack.c.l.b16 %v408
        %v477 = vunpack.c.l.b16 %v409
        %v478 = vunpack.c.l.b16 %v410
        %v479 = vunpack.c.l.b16 %v411
        %v480 = vunpack.c.l.b16 %v412
        %v481 = vunpack.c.l.b16 %v413
        %v482 = vunpack.c.l.b16 %v414
        %v483 = vunpack.c.l.b16 %v415
        %v484 = vunpack.c.l.b16 %v416
        %v485 = vunpack.c.l.b16 %v417
        %v486 = vunpack.c.l.b16 %v418
        %v487 = vunpack.c.l.b16 %v419
        %v488 = vunpack.c.l.b16 %v420
        %v489 = vunpack.c.l.b16 %v421
        %v490 = vunpack.c.l.b16 %v422
        %v491 = vunpack.c.l.b16 %v423
        %v492 = vunpack.c.l.b16 %v424
        %v493 = vunpack.c.l.b16 %v425
        %v494 = vunpack.c.l.b16 %v426
        %v495 = vunpack.c.l.b16 %v427
        %v496 = vunpack.c.l.b16 %v428
        %v497 = vunpack.c.l.b16 %v429
        %v498 = vunpack.c.l.b16 %v430
        %v499 = vunpack.c.l.b16 %v431
        %v500 = vpack.c.b16 %v469, %v468
        %v501 = vpack.c.b16 %v471, %v470
        %v502 = vpack.c.b16 %v473, %v472
        %v503 = vpack.c.b16 %v475, %v474
        %v504 = vpack.c.b16 %v477, %v476
        %v505 = vpack.c.b16 %v479, %v478
        %v506 = vpack.c.b16 %v481, %v480
        %v507 = vpack.c.b16 %v483, %v482
        %v508 = vpack.c.b16 %v485, %v484
        %v509 = vpack.c.b16 %v487, %v486
        %v510 = vpack.c.b16 %v489, %v488
        %v511 = vpack.c.b16 %v491, %v490
        %v512 = vpack.c.b16 %v493, %v492
        %v513 = vpack.c.b16 %v495, %v494
        %v514 = vpack.c.b16 %v497, %v496
        %v515 = vpack.c.b16 %v499, %v498
        %532 = vmatpush.bf16.msra.mxu0 %v507
        %533 = vmatpush.bf16.msra.mxu0 %v506
        %534 = vmatpush.bf16.msra.mxu0 %v505
        %535 = vmatpush.bf16.msra.mxu0 %v504
        %536 = vmatpush.bf16.msra.mxu0 %v503
        %537 = vmatpush.bf16.msra.mxu0 %v502
        %538 = vmatpush.bf16.msra.mxu0 %v501
        %539 = vmatpush.bf16.msra.mxu0 %v500
        %540 = vmatmul.bf16.gmra.mxu0 %v368
        %v541 = vpop.f32.mrf.mxu0
        %v542 = vadd.f32 %v434, %v541
        %v543 = vpop.f32.mrf.mxu0
        %v544 = vadd.f32 %v434, %v543
        %545 = vmatmul.bf16.gmra.mxu0 %v370
        %v546 = vpop.f32.mrf.mxu0
        %v547 = vadd.f32 %v434, %v546
        %v548 = vpop.f32.mrf.mxu0
        %v549 = vadd.f32 %v434, %v548
        %550 = vmatmul.bf16.gmra.mxu0 %v372
        %v551 = vpop.f32.mrf.mxu0
        %v552 = vadd.f32 %v434, %v551
        %v553 = vpop.f32.mrf.mxu0
        %v554 = vadd.f32 %v434, %v553
        %555 = vmatmul.bf16.gmra.mxu0 %v374
        %v556 = vpop.f32.mrf.mxu0
        %v557 = vadd.f32 %v434, %v556
        %v558 = vpop.f32.mrf.mxu0
        %v559 = vadd.f32 %v434, %v558
        %560 = vmatmul.bf16.gmra.mxu0 %v376
        %v561 = vpop.f32.mrf.mxu0
        %v562 = vadd.f32 %v434, %v561
        %v563 = vpop.f32.mrf.mxu0
        %v564 = vadd.f32 %v434, %v563
        %565 = vmatmul.bf16.gmra.mxu0 %v378
        %v566 = vpop.f32.mrf.mxu0
        %v567 = vadd.f32 %v434, %v566
        %v568 = vpop.f32.mrf.mxu0
        %v569 = vadd.f32 %v434, %v568
        %570 = vmatmul.bf16.gmra.mxu0 %v380
        %v571 = vpop.f32.mrf.mxu0
        %v572 = vadd.f32 %v434, %v571
        %v573 = vpop.f32.mrf.mxu0
        %v574 = vadd.f32 %v434, %v573
        %575 = vmatmul.bf16.gmra.mxu0 %v382
        %v576 = vpop.f32.mrf.mxu0
        %v577 = vadd.f32 %v434, %v576
        %v578 = vpop.f32.mrf.mxu0
        %v579 = vadd.f32 %v434, %v578
        %580 = vmatmul.bf16.gmra.mxu0 %v384
        %v581 = vpop.f32.mrf.mxu0
        %v582 = vadd.f32 %v434, %v581
        %v583 = vpop.f32.mrf.mxu0
        %v584 = vadd.f32 %v434, %v583
        %585 = vmatmul.bf16.gmra.mxu0 %v386
        %v586 = vpop.f32.mrf.mxu0
        %v587 = vadd.f32 %v434, %v586
        %v588 = vpop.f32.mrf.mxu0
        %v589 = vadd.f32 %v434, %v588
        %590 = vmatmul.bf16.gmra.mxu0 %v388
        %v591 = vpop.f32.mrf.mxu0
        %v592 = vadd.f32 %v434, %v591
        %v593 = vpop.f32.mrf.mxu0
        %v594 = vadd.f32 %v434, %v593
        %595 = vmatmul.bf16.gmra.mxu0 %v390
        %v596 = vpop.f32.mrf.mxu0
        %v597 = vadd.f32 %v434, %v596
        %v598 = vpop.f32.mrf.mxu0
        %v599 = vadd.f32 %v434, %v598
        %600 = vmatmul.bf16.gmra.mxu0 %v392
        %v601 = vpop.f32.mrf.mxu0
        %v602 = vadd.f32 %v434, %v601
        %v603 = vpop.f32.mrf.mxu0
        %v604 = vadd.f32 %v434, %v603
        %605 = vmatmul.bf16.gmra.mxu0 %v394
        %v606 = vpop.f32.mrf.mxu0
        %v607 = vadd.f32 %v434, %v606
        %v608 = vpop.f32.mrf.mxu0
        %v609 = vadd.f32 %v434, %v608
        %610 = vmatmul.bf16.gmra.mxu0 %v396
        %v611 = vpop.f32.mrf.mxu0
        %v612 = vadd.f32 %v434, %v611
        %v613 = vpop.f32.mrf.mxu0
        %v614 = vadd.f32 %v434, %v613
        %615 = vmatmul.bf16.gmra.mxu0 %v398
        %v616 = vpop.f32.mrf.mxu0
        %v617 = vadd.f32 %v434, %v616
        %v618 = vpop.f32.mrf.mxu0
        %v619 = vadd.f32 %v434, %v618
        %620 = vdwg.mxu0
        %621 = vmatpush.bf16.msra.mxu0 %v515
        %622 = vmatpush.bf16.msra.mxu0 %v514
        %623 = vmatpush.bf16.msra.mxu0 %v513
        %624 = vmatpush.bf16.msra.mxu0 %v512
        %625 = vmatpush.bf16.msra.mxu0 %v511
        %626 = vmatpush.bf16.msra.mxu0 %v510
        %627 = vmatpush.bf16.msra.mxu0 %v509
        %628 = vmatpush.bf16.msra.mxu0 %v508
        %629 = vmatmul.bf16.gmra.mxu0 %v369
        %v630 = vpop.f32.mrf.mxu0
        %v631 = vadd.f32 %v542, %v630
        %v632 = vpop.f32.mrf.mxu0
        %v633 = vadd.f32 %v544, %v632
        %634 = vmatmul.bf16.gmra.mxu0 %v371
        %v635 = vpop.f32.mrf.mxu0
        %v636 = vadd.f32 %v547, %v635
        %v637 = vpop.f32.mrf.mxu0
        %v638 = vadd.f32 %v549, %v637
        %639 = vmatmul.bf16.gmra.mxu0 %v373
        %v640 = vpop.f32.mrf.mxu0
        %v641 = vadd.f32 %v552, %v640
        %v642 = vpop.f32.mrf.mxu0
        %v643 = vadd.f32 %v554, %v642
        %644 = vmatmul.bf16.gmra.mxu0 %v375
        %v645 = vpop.f32.mrf.mxu0
        %v646 = vadd.f32 %v557, %v645
        %v647 = vpop.f32.mrf.mxu0
        %v648 = vadd.f32 %v559, %v647
        %649 = vmatmul.bf16.gmra.mxu0 %v377
        %v650 = vpop.f32.mrf.mxu0
        %v651 = vadd.f32 %v562, %v650
        %v652 = vpop.f32.mrf.mxu0
        %v653 = vadd.f32 %v564, %v652
        %654 = vmatmul.bf16.gmra.mxu0 %v379
        %v655 = vpop.f32.mrf.mxu0
        %v656 = vadd.f32 %v567, %v655
        %v657 = vpop.f32.mrf.mxu0
        %v658 = vadd.f32 %v569, %v657
        %659 = vmatmul.bf16.gmra.mxu0 %v381
        %v660 = vpop.f32.mrf.mxu0
        %v661 = vadd.f32 %v572, %v660
        %v662 = vpop.f32.mrf.mxu0
        %v663 = vadd.f32 %v574, %v662
        %664 = vmatmul.bf16.gmra.mxu0 %v383
        %v665 = vpop.f32.mrf.mxu0
        %v666 = vadd.f32 %v577, %v665
        %v667 = vpop.f32.mrf.mxu0
        %v668 = vadd.f32 %v579, %v667
        %669 = vmatmul.bf16.gmra.mxu0 %v385
        %v670 = vpop.f32.mrf.mxu0
        %v671 = vadd.f32 %v582, %v670
        %v672 = vpop.f32.mrf.mxu0
        %v673 = vadd.f32 %v584, %v672
        %674 = vmatmul.bf16.gmra.mxu0 %v387
        %v675 = vpop.f32.mrf.mxu0
        %v676 = vadd.f32 %v587, %v675
        %v677 = vpop.f32.mrf.mxu0
        %v678 = vadd.f32 %v589, %v677
        %679 = vmatmul.bf16.gmra.mxu0 %v389
        %v680 = vpop.f32.mrf.mxu0
        %v681 = vadd.f32 %v592, %v680
        %v682 = vpop.f32.mrf.mxu0
        %v683 = vadd.f32 %v594, %v682
        %684 = vmatmul.bf16.gmra.mxu0 %v391
        %v685 = vpop.f32.mrf.mxu0
        %v686 = vadd.f32 %v597, %v685
        %v687 = vpop.f32.mrf.mxu0
        %v688 = vadd.f32 %v599, %v687
        %689 = vmatmul.bf16.gmra.mxu0 %v393
        %v690 = vpop.f32.mrf.mxu0
        %v691 = vadd.f32 %v602, %v690
        %v692 = vpop.f32.mrf.mxu0
        %v693 = vadd.f32 %v604, %v692
        %694 = vmatmul.bf16.gmra.mxu0 %v395
        %v695 = vpop.f32.mrf.mxu0
        %v696 = vadd.f32 %v607, %v695
        %v697 = vpop.f32.mrf.mxu0
        %v698 = vadd.f32 %v609, %v697
        %699 = vmatmul.bf16.gmra.mxu0 %v397
        %v700 = vpop.f32.mrf.mxu0
        %v701 = vadd.f32 %v612, %v700
        %v702 = vpop.f32.mrf.mxu0
        %v703 = vadd.f32 %v614, %v702
        %704 = vmatmul.bf16.gmra.mxu0 %v399
        %v705 = vpop.f32.mrf.mxu0
        %v706 = vadd.f32 %v617, %v705
        %v707 = vpop.f32.mrf.mxu0
        %v708 = vadd.f32 %v619, %v707
        %709 = vdwg.mxu0
        %v710 = vmax.f32 %v631, 0.0
        %v711 = vmax.f32 %v633, 0.0
        %v712 = vmax.f32 %v636, 0.0
        %v713 = vmax.f32 %v638, 0.0
        %v714 = vmax.f32 %v641, 0.0
        %v715 = vmax.f32 %v643, 0.0
        %v716 = vmax.f32 %v646, 0.0
        %v717 = vmax.f32 %v648, 0.0
        %v718 = vmax.f32 %v651, 0.0
        %v719 = vmax.f32 %v653, 0.0
        %v720 = vmax.f32 %v656, 0.0
        %v721 = vmax.f32 %v658, 0.0
        %v722 = vmax.f32 %v661, 0.0
        %v723 = vmax.f32 %v663, 0.0
        %v724 = vmax.f32 %v666, 0.0
        %v725 = vmax.f32 %v668, 0.0
        %v726 = vmax.f32 %v671, 0.0
        %v727 = vmax.f32 %v673, 0.0
        %v728 = vmax.f32 %v676, 0.0
        %v729 = vmax.f32 %v678, 0.0
        %v730 = vmax.f32 %v681, 0.0
        %v731 = vmax.f32 %v683, 0.0
        %v732 = vmax.f32 %v686, 0.0
        %v733 = vmax.f32 %v688, 0.0
        %v734 = vmax.f32 %v691, 0.0
        %v735 = vmax.f32 %v693, 0.0
        %v736 = vmax.f32 %v696, 0.0
        %v737 = vmax.f32 %v698, 0.0
        %v738 = vmax.f32 %v701, 0.0
        %v739 = vmax.f32 %v703, 0.0
        %v740 = vmax.f32 %v706, 0.0
        %v741 = vmax.f32 %v708, 0.0
        %v742 = vpack.c.bf16 %v711, %v710
        %v743 = vpack.c.bf16 %v713, %v712
        %v744 = vpack.c.bf16 %v715, %v714
        %v745 = vpack.c.bf16 %v717, %v716
        %v746 = vpack.c.bf16 %v719, %v718
        %v747 = vpack.c.bf16 %v721, %v720
        %v748 = vpack.c.bf16 %v723, %v722
        %v749 = vpack.c.bf16 %v725, %v724
        %v750 = vpack.c.bf16 %v727, %v726
        %v751 = vpack.c.bf16 %v729, %v728
        %v752 = vpack.c.bf16 %v731, %v730
        %v753 = vpack.c.bf16 %v733, %v732
        %v754 = vpack.c.bf16 %v735, %v734
        %v755 = vpack.c.bf16 %v737, %v736
        %v756 = vpack.c.bf16 %v739, %v738
        %v757 = vpack.c.bf16 %v741, %v740
        %v758 = vld [vmem:[%s3] sm:$0xf]
        %v759 = vld [vmem:[%s3 + $0x4] sm:$0xf]
        %v760 = vld [vmem:[%s3 + $0x8] sm:$0xf]
        %v761 = vld [vmem:[%s3 + $0xc] sm:$0xf]
        %v762 = vld [vmem:[%s3 + $0x10] sm:$0xf]
        %v763 = vld [vmem:[%s3 + $0x14] sm:$0xf]
        %v764 = vld [vmem:[%s3 + $0x18] sm:$0xf]
        %v765 = vld [vmem:[%s3 + $0x1c] sm:$0xf]
        %v766 = vld [vmem:[%s3 + $0x20] sm:$0xf]
        %v767 = vld [vmem:[%s3 + $0x24] sm:$0xf]
        %v768 = vld [vmem:[%s3 + $0x28] sm:$0xf]
        %v769 = vld [vmem:[%s3 + $0x2c] sm:$0xf]
        %v770 = vld [vmem:[%s3 + $0x30] sm:$0xf]
        %v771 = vld [vmem:[%s3 + $0x34] sm:$0xf]
        %v772 = vld [vmem:[%s3 + $0x38] sm:$0xf]
        %v773 = vld [vmem:[%s3 + $0x3c] sm:$0xf]
        %v774 = vld [vmem:[%s4] sm:$0x1]
        %v776 = vperm.slane %v774, 0
        %v794 = vunpack.c.l.b16 %v758
        %v795 = vunpack.c.l.b16 %v759
        %v796 = vunpack.c.l.b16 %v760
        %v797 = vunpack.c.l.b16 %v761
        %v798 = vunpack.c.l.b16 %v762
        %v799 = vunpack.c.l.b16 %v763
        %v800 = vunpack.c.l.b16 %v764
        %v801 = vunpack.c.l.b16 %v765
        %v802 = vunpack.c.l.b16 %v766
        %v803 = vunpack.c.l.b16 %v767
        %v804 = vunpack.c.l.b16 %v768
        %v805 = vunpack.c.l.b16 %v769
        %v806 = vunpack.c.l.b16 %v770
        %v807 = vunpack.c.l.b16 %v771
        %v808 = vunpack.c.l.b16 %v772
        %v809 = vunpack.c.l.b16 %v773
        %v810 = vpack.c.b16 %v795, %v794
        %v811 = vpack.c.b16 %v797, %v796
        %v812 = vpack.c.b16 %v799, %v798
        %v813 = vpack.c.b16 %v801, %v800
        %v814 = vpack.c.b16 %v803, %v802
        %v815 = vpack.c.b16 %v805, %v804
        %v816 = vpack.c.b16 %v807, %v806
        %v817 = vpack.c.b16 %v809, %v808
        %826 = vmatpush.bf16.msra.mxu0 %v817
        %827 = vmatpush.bf16.msra.mxu0 %v816
        %828 = vmatpush.bf16.msra.mxu0 %v815
        %829 = vmatpush.bf16.msra.mxu0 %v814
        %830 = vmatpush.bf16.msra.mxu0 %v813
        %831 = vmatpush.bf16.msra.mxu0 %v812
        %832 = vmatpush.bf16.msra.mxu0 %v811
        %833 = vmatpush.bf16.msra.mxu0 %v810
        %834 = vmatmul.bf16.gmra.mxu0 %v742
        %v835 = vpop.f32.mrf.mxu0
        %v836 = vadd.f32 %v776, %v835
        %v837 = vpop.f32.mrf.mxu0
        %v838 = vadd.f32 %v776, %v837
        %839 = vmatmul.bf16.gmra.mxu0 %v743
        %v840 = vpop.f32.mrf.mxu0
        %v841 = vadd.f32 %v776, %v840
        %v842 = vpop.f32.mrf.mxu0
        %v843 = vadd.f32 %v776, %v842
        %844 = vmatmul.bf16.gmra.mxu0 %v744
        %v845 = vpop.f32.mrf.mxu0
        %v846 = vadd.f32 %v776, %v845
        %v847 = vpop.f32.mrf.mxu0
        %v848 = vadd.f32 %v776, %v847
        %849 = vmatmul.bf16.gmra.mxu0 %v745
        %v850 = vpop.f32.mrf.mxu0
        %v851 = vadd.f32 %v776, %v850
        %v852 = vpop.f32.mrf.mxu0
        %v853 = vadd.f32 %v776, %v852
        %854 = vmatmul.bf16.gmra.mxu0 %v746
        %v855 = vpop.f32.mrf.mxu0
        %v856 = vadd.f32 %v776, %v855
        %v857 = vpop.f32.mrf.mxu0
        %v858 = vadd.f32 %v776, %v857
        %859 = vmatmul.bf16.gmra.mxu0 %v747
        %v860 = vpop.f32.mrf.mxu0
        %v861 = vadd.f32 %v776, %v860
        %v862 = vpop.f32.mrf.mxu0
        %v863 = vadd.f32 %v776, %v862
        %864 = vmatmul.bf16.gmra.mxu0 %v748
        %v865 = vpop.f32.mrf.mxu0
        %v866 = vadd.f32 %v776, %v865
        %v867 = vpop.f32.mrf.mxu0
        %v868 = vadd.f32 %v776, %v867
        %869 = vmatmul.bf16.gmra.mxu0 %v749
        %v870 = vpop.f32.mrf.mxu0
        %v871 = vadd.f32 %v776, %v870
        %v872 = vpop.f32.mrf.mxu0
        %v873 = vadd.f32 %v776, %v872
        %874 = vmatmul.bf16.gmra.mxu0 %v750
        %v875 = vpop.f32.mrf.mxu0
        %v876 = vadd.f32 %v776, %v875
        %v877 = vpop.f32.mrf.mxu0
        %v878 = vadd.f32 %v776, %v877
        %879 = vmatmul.bf16.gmra.mxu0 %v751
        %v880 = vpop.f32.mrf.mxu0
        %v881 = vadd.f32 %v776, %v880
        %v882 = vpop.f32.mrf.mxu0
        %v883 = vadd.f32 %v776, %v882
        %884 = vmatmul.bf16.gmra.mxu0 %v752
        %v885 = vpop.f32.mrf.mxu0
        %v886 = vadd.f32 %v776, %v885
        %v887 = vpop.f32.mrf.mxu0
        %v888 = vadd.f32 %v776, %v887
        %889 = vmatmul.bf16.gmra.mxu0 %v753
        %v890 = vpop.f32.mrf.mxu0
        %v891 = vadd.f32 %v776, %v890
        %v892 = vpop.f32.mrf.mxu0
        %v893 = vadd.f32 %v776, %v892
        %894 = vmatmul.bf16.gmra.mxu0 %v754
        %v895 = vpop.f32.mrf.mxu0
        %v896 = vadd.f32 %v776, %v895
        %v897 = vpop.f32.mrf.mxu0
        %v898 = vadd.f32 %v776, %v897
        %899 = vmatmul.bf16.gmra.mxu0 %v755
        %v900 = vpop.f32.mrf.mxu0
        %v901 = vadd.f32 %v776, %v900
        %v902 = vpop.f32.mrf.mxu0
        %v903 = vadd.f32 %v776, %v902
        %904 = vmatmul.bf16.gmra.mxu0 %v756
        %v905 = vpop.f32.mrf.mxu0
        %v906 = vadd.f32 %v776, %v905
        %v907 = vpop.f32.mrf.mxu0
        %v908 = vadd.f32 %v776, %v907
        %909 = vmatmul.bf16.gmra.mxu0 %v757
        %v910 = vpop.f32.mrf.mxu0
        %v911 = vadd.f32 %v776, %v910
        %v912 = vpop.f32.mrf.mxu0
        %v913 = vadd.f32 %v776, %v912
        %914 = vdwg.mxu0
        %v915 = vmax.f32 %v836, 0.0
        %v916 = vmax.f32 %v838, 0.0
        %v917 = vmax.f32 %v841, 0.0
        %v918 = vmax.f32 %v843, 0.0
        %v919 = vmax.f32 %v846, 0.0
        %v920 = vmax.f32 %v848, 0.0
        %v921 = vmax.f32 %v851, 0.0
        %v922 = vmax.f32 %v853, 0.0
        %v923 = vmax.f32 %v856, 0.0
        %v924 = vmax.f32 %v858, 0.0
        %v925 = vmax.f32 %v861, 0.0
        %v926 = vmax.f32 %v863, 0.0
        %v927 = vmax.f32 %v866, 0.0
        %v928 = vmax.f32 %v868, 0.0
        %v929 = vmax.f32 %v871, 0.0
        %v930 = vmax.f32 %v873, 0.0
        %v931 = vmax.f32 %v876, 0.0
        %v932 = vmax.f32 %v878, 0.0
        %v933 = vmax.f32 %v881, 0.0
        %v934 = vmax.f32 %v883, 0.0
        %v935 = vmax.f32 %v886, 0.0
        %v936 = vmax.f32 %v888, 0.0
        %v937 = vmax.f32 %v891, 0.0
        %v938 = vmax.f32 %v893, 0.0
        %v939 = vmax.f32 %v896, 0.0
        %v940 = vmax.f32 %v898, 0.0
        %v941 = vmax.f32 %v901, 0.0
        %v942 = vmax.f32 %v903, 0.0
        %v943 = vmax.f32 %v906, 0.0
        %v944 = vmax.f32 %v908, 0.0
        %v945 = vmax.f32 %v911, 0.0
        %v946 = vmax.f32 %v913, 0.0
        %v947 = vpack.c.bf16 %v916, %v915
        %v948 = vpack.c.bf16 %v918, %v917
        %v949 = vpack.c.bf16 %v920, %v919
        %v950 = vpack.c.bf16 %v922, %v921
        %v951 = vpack.c.bf16 %v924, %v923
        %v952 = vpack.c.bf16 %v926, %v925
        %v953 = vpack.c.bf16 %v928, %v927
        %v954 = vpack.c.bf16 %v930, %v929
        %v955 = vpack.c.bf16 %v932, %v931
        %v956 = vpack.c.bf16 %v934, %v933
        %v957 = vpack.c.bf16 %v936, %v935
        %v958 = vpack.c.bf16 %v938, %v937
        %v959 = vpack.c.bf16 %v940, %v939
        %v960 = vpack.c.bf16 %v942, %v941
        %v961 = vpack.c.bf16 %v944, %v943
        %v962 = vpack.c.bf16 %v946, %v945
        %v963 = vld [vmem:[%s5] sm:$0xf]
        %v964 = vld [vmem:[%s5 + $0x4] sm:$0xf]
        %v965 = vld [vmem:[%s5 + $0x8] sm:$0xf]
        %v966 = vld [vmem:[%s5 + $0xc] sm:$0xf]
        %v967 = vld [vmem:[%s5 + $0x10] sm:$0xf]
        %v968 = vld [vmem:[%s5 + $0x14] sm:$0xf]
        %v969 = vld [vmem:[%s5 + $0x18] sm:$0xf]
        %v970 = vld [vmem:[%s5 + $0x1c] sm:$0xf]
        %v971 = vld [vmem:[%s5 + $0x20] sm:$0xf]
        %v972 = vld [vmem:[%s5 + $0x24] sm:$0xf]
        %v973 = vld [vmem:[%s5 + $0x28] sm:$0xf]
        %v974 = vld [vmem:[%s5 + $0x2c] sm:$0xf]
        %v975 = vld [vmem:[%s5 + $0x30] sm:$0xf]
        %v976 = vld [vmem:[%s5 + $0x34] sm:$0xf]
        %v977 = vld [vmem:[%s5 + $0x38] sm:$0xf]
        %v978 = vld [vmem:[%s5 + $0x3c] sm:$0xf]
        %v979 = vld [vmem:[%s6] sm:$0x1]
        %v981 = vperm.slane %v979, 0
        %v999 = vunpack.c.l.b16 %v963
        %v1000 = vunpack.c.l.b16 %v964
        %v1001 = vunpack.c.l.b16 %v965
        %v1002 = vunpack.c.l.b16 %v966
        %v1003 = vunpack.c.l.b16 %v967
        %v1004 = vunpack.c.l.b16 %v968
        %v1005 = vunpack.c.l.b16 %v969
        %v1006 = vunpack.c.l.b16 %v970
        %v1007 = vunpack.c.l.b16 %v971
        %v1008 = vunpack.c.l.b16 %v972
        %v1009 = vunpack.c.l.b16 %v973
        %v1010 = vunpack.c.l.b16 %v974
        %v1011 = vunpack.c.l.b16 %v975
        %v1012 = vunpack.c.l.b16 %v976
        %v1013 = vunpack.c.l.b16 %v977
        %v1014 = vunpack.c.l.b16 %v978
        %v1015 = vpack.c.b16 %v1000, %v999
        %v1016 = vpack.c.b16 %v1002, %v1001
        %v1017 = vpack.c.b16 %v1004, %v1003
        %v1018 = vpack.c.b16 %v1006, %v1005
        %v1019 = vpack.c.b16 %v1008, %v1007
        %v1020 = vpack.c.b16 %v1010, %v1009
        %v1021 = vpack.c.b16 %v1012, %v1011
        %v1022 = vpack.c.b16 %v1014, %v1013
        %1031 = vmatpush.bf16.msra.mxu0 %v1022
        %1032 = vmatpush.bf16.msra.mxu0 %v1021
        %1033 = vmatpush.bf16.msra.mxu0 %v1020
        %1034 = vmatpush.bf16.msra.mxu0 %v1019
        %1035 = vmatpush.bf16.msra.mxu0 %v1018
        %1036 = vmatpush.bf16.msra.mxu0 %v1017
        %1037 = vmatpush.bf16.msra.mxu0 %v1016
        %1038 = vmatpush.bf16.msra.mxu0 %v1015
        %1039 = vmatmul.bf16.gmra.mxu0 %v947
        %v1040 = vpop.f32.mrf.mxu0
        %v1041 = vadd.f32 %v981, %v1040
        %v1042 = vpop.f32.mrf.mxu0
        %v1043 = vadd.f32 %v981, %v1042
        %1044 = vmatmul.bf16.gmra.mxu0 %v948
        %v1045 = vpop.f32.mrf.mxu0
        %v1046 = vadd.f32 %v981, %v1045
        %v1047 = vpop.f32.mrf.mxu0
        %v1048 = vadd.f32 %v981, %v1047
        %1049 = vmatmul.bf16.gmra.mxu0 %v949
        %v1050 = vpop.f32.mrf.mxu0
        %v1051 = vadd.f32 %v981, %v1050
        %v1052 = vpop.f32.mrf.mxu0
        %v1053 = vadd.f32 %v981, %v1052
        %1054 = vmatmul.bf16.gmra.mxu0 %v950
        %v1055 = vpop.f32.mrf.mxu0
        %v1056 = vadd.f32 %v981, %v1055
        %v1057 = vpop.f32.mrf.mxu0
        %v1058 = vadd.f32 %v981, %v1057
        %1059 = vmatmul.bf16.gmra.mxu0 %v951
        %v1060 = vpop.f32.mrf.mxu0
        %v1061 = vadd.f32 %v981, %v1060
        %v1062 = vpop.f32.mrf.mxu0
        %v1063 = vadd.f32 %v981, %v1062
        %1064 = vmatmul.bf16.gmra.mxu0 %v952
        %v1065 = vpop.f32.mrf.mxu0
        %v1066 = vadd.f32 %v981, %v1065
        %v1067 = vpop.f32.mrf.mxu0
        %v1068 = vadd.f32 %v981, %v1067
        %1069 = vmatmul.bf16.gmra.mxu0 %v953
        %v1070 = vpop.f32.mrf.mxu0
        %v1071 = vadd.f32 %v981, %v1070
        %v1072 = vpop.f32.mrf.mxu0
        %v1073 = vadd.f32 %v981, %v1072
        %1074 = vmatmul.bf16.gmra.mxu0 %v954
        %v1075 = vpop.f32.mrf.mxu0
        %v1076 = vadd.f32 %v981, %v1075
        %v1077 = vpop.f32.mrf.mxu0
        %v1078 = vadd.f32 %v981, %v1077
        %1079 = vmatmul.bf16.gmra.mxu0 %v955
        %v1080 = vpop.f32.mrf.mxu0
        %v1081 = vadd.f32 %v981, %v1080
        %v1082 = vpop.f32.mrf.mxu0
        %v1083 = vadd.f32 %v981, %v1082
        %1084 = vmatmul.bf16.gmra.mxu0 %v956
        %v1085 = vpop.f32.mrf.mxu0
        %v1086 = vadd.f32 %v981, %v1085
        %v1087 = vpop.f32.mrf.mxu0
        %v1088 = vadd.f32 %v981, %v1087
        %1089 = vmatmul.bf16.gmra.mxu0 %v957
        %v1090 = vpop.f32.mrf.mxu0
        %v1091 = vadd.f32 %v981, %v1090
        %v1092 = vpop.f32.mrf.mxu0
        %v1093 = vadd.f32 %v981, %v1092
        %1094 = vmatmul.bf16.gmra.mxu0 %v958
        %v1095 = vpop.f32.mrf.mxu0
        %v1096 = vadd.f32 %v981, %v1095
        %v1097 = vpop.f32.mrf.mxu0
        %v1098 = vadd.f32 %v981, %v1097
        %1099 = vmatmul.bf16.gmra.mxu0 %v959
        %v1100 = vpop.f32.mrf.mxu0
        %v1101 = vadd.f32 %v981, %v1100
        %v1102 = vpop.f32.mrf.mxu0
        %v1103 = vadd.f32 %v981, %v1102
        %1104 = vmatmul.bf16.gmra.mxu0 %v960
        %v1105 = vpop.f32.mrf.mxu0
        %v1106 = vadd.f32 %v981, %v1105
        %v1107 = vpop.f32.mrf.mxu0
        %v1108 = vadd.f32 %v981, %v1107
        %1109 = vmatmul.bf16.gmra.mxu0 %v961
        %v1110 = vpop.f32.mrf.mxu0
        %v1111 = vadd.f32 %v981, %v1110
        %v1112 = vpop.f32.mrf.mxu0
        %v1113 = vadd.f32 %v981, %v1112
        %1114 = vmatmul.bf16.gmra.mxu0 %v962
        %v1115 = vpop.f32.mrf.mxu0
        %v1116 = vadd.f32 %v981, %v1115
        %v1117 = vpop.f32.mrf.mxu0
        %v1118 = vadd.f32 %v981, %v1117
        %1119 = vdwg.mxu0
        %v1120 = vpack.c.bf16 %v1041, %v1041
        %v1121 = vpack.c.bf16 %v1043, %v1043
        %v1122 = vpack.c.bf16 %v1046, %v1046
        %v1123 = vpack.c.bf16 %v1048, %v1048
        %v1124 = vpack.c.bf16 %v1051, %v1051
        %v1125 = vpack.c.bf16 %v1053, %v1053
        %v1126 = vpack.c.bf16 %v1056, %v1056
        %v1127 = vpack.c.bf16 %v1058, %v1058
        %v1128 = vpack.c.bf16 %v1061, %v1061
        %v1129 = vpack.c.bf16 %v1063, %v1063
        %v1130 = vpack.c.bf16 %v1066, %v1066
        %v1131 = vpack.c.bf16 %v1068, %v1068
        %v1132 = vpack.c.bf16 %v1071, %v1071
        %v1133 = vpack.c.bf16 %v1073, %v1073
        %v1134 = vpack.c.bf16 %v1076, %v1076
        %v1135 = vpack.c.bf16 %v1078, %v1078
        %v1136 = vpack.c.bf16 %v1081, %v1081
        %v1137 = vpack.c.bf16 %v1083, %v1083
        %v1138 = vpack.c.bf16 %v1086, %v1086
        %v1139 = vpack.c.bf16 %v1088, %v1088
        %v1140 = vpack.c.bf16 %v1091, %v1091
        %v1141 = vpack.c.bf16 %v1093, %v1093
        %v1142 = vpack.c.bf16 %v1096, %v1096
        %v1143 = vpack.c.bf16 %v1098, %v1098
        %v1144 = vpack.c.bf16 %v1101, %v1101
        %v1145 = vpack.c.bf16 %v1103, %v1103
        %v1146 = vpack.c.bf16 %v1106, %v1106
        %v1147 = vpack.c.bf16 %v1108, %v1108
        %v1148 = vpack.c.bf16 %v1111, %v1111
        %v1149 = vpack.c.bf16 %v1113, %v1113
        %v1150 = vpack.c.bf16 %v1116, %v1116
        %v1151 = vpack.c.bf16 %v1118, %v1118
        %1152 = vst [vmem:[%s302] sm:$0xf] %v1120
        %1153 = vst [vmem:[%s302 + $0x4] sm:$0xf] %v1121
        %1154 = vst [vmem:[%s302 + $0x8] sm:$0xf] %v1122
        %1155 = vst [vmem:[%s302 + $0xc] sm:$0xf] %v1123
        %1156 = vst [vmem:[%s302 + $0x10] sm:$0xf] %v1124
        %1157 = vst [vmem:[%s302 + $0x14] sm:$0xf] %v1125
        %1158 = vst [vmem:[%s302 + $0x18] sm:$0xf] %v1126
        %1159 = vst [vmem:[%s302 + $0x1c] sm:$0xf] %v1127
        %1160 = vst [vmem:[%s302 + $0x20] sm:$0xf] %v1128
        %1161 = vst [vmem:[%s302 + $0x24] sm:$0xf] %v1129
        %1162 = vst [vmem:[%s302 + $0x28] sm:$0xf] %v1130
        %1163 = vst [vmem:[%s302 + $0x2c] sm:$0xf] %v1131
        %1164 = vst [vmem:[%s302 + $0x30] sm:$0xf] %v1132
        %1165 = vst [vmem:[%s302 + $0x34] sm:$0xf] %v1133
        %1166 = vst [vmem:[%s302 + $0x38] sm:$0xf] %v1134
        %1167 = vst [vmem:[%s302 + $0x3c] sm:$0xf] %v1135
        %1168 = vst [vmem:[%s302 + $0x40] sm:$0xf] %v1136
        %1169 = vst [vmem:[%s302 + $0x44] sm:$0xf] %v1137
        %1170 = vst [vmem:[%s302 + $0x48] sm:$0xf] %v1138
        %1171 = vst [vmem:[%s302 + $0x4c] sm:$0xf] %v1139
        %1172 = vst [vmem:[%s302 + $0x50] sm:$0xf] %v1140
        %1173 = vst [vmem:[%s302 + $0x54] sm:$0xf] %v1141
        %1174 = vst [vmem:[%s302 + $0x58] sm:$0xf] %v1142
        %1175 = vst [vmem:[%s302 + $0x5c] sm:$0xf] %v1143
        %1176 = vst [vmem:[%s302 + $0x60] sm:$0xf] %v1144
        %1177 = vst [vmem:[%s302 + $0x64] sm:$0xf] %v1145
        %1178 = vst [vmem:[%s302 + $0x68] sm:$0xf] %v1146
        %1179 = vst [vmem:[%s302 + $0x6c] sm:$0xf] %v1147
        %1180 = vst [vmem:[%s302 + $0x70] sm:$0xf] %v1148
        %1181 = vst [vmem:[%s302 + $0x74] sm:$0xf] %v1149
        %1182 = vst [vmem:[%s302 + $0x78] sm:$0xf] %v1150
        %1183 = vst [vmem:[%s302 + $0x7c] sm:$0xf] %v1151
        %s1184 = smul.u32 32, %s21
        %p1185 = scmp.lt.s32.totalorder %s1184, 63
        %s1186 = scalar_select %p1185, %s1184, 63
        %s1187 = smul.addr %s1186, 4
        %s1188 = scalar_lea.vmem %s7, %s1187
        // Predicated region
        $region53: #{mnist_nn_forward.1} parent=47 // pred_check
          %p1189 = pneg %p191
        $region54: #{mnist_nn_forward.1} parent=47 // pred_check_branch
          %1191 = sbr.rel (%p1189) target = $region56
        $region55: #{mnist_nn_forward.1} parent=47 // pred_region
          %s1192 = smul.u32 32, %s21
        $region56: #{mnist_nn_forward.1} parent=47 // pred_fallthru
          _
      $region48: #{mnist_nn_forward.1} parent=5 // pred_fallthru
        _
      %p1193 = scmp.le.s32.totalorder 2, %s16
      // Predicated region
      $region57: #{mnist_nn_forward.1} parent=5 // pred_check
        %p1194 = pneg %p1193
      $region58: #{mnist_nn_forward.1} parent=5 // pred_check_branch
        %1196 = sbr.rel (%p1194) target = $region60
      $region59: #{mnist_nn_forward.1} parent=5 // pred_region
        %s1197 = ssub.s32 %s16, 2
        // Predicated region
        $region61: #{mnist_nn_forward.1} parent=59 // pred_check
          %p1198 = pneg %p197
        $region62: #{mnist_nn_forward.1} parent=59 // pred_check_branch
          %1200 = sbr.rel (%p1198) target = $region64
        $region63: #{mnist_nn_forward.1} parent=59 // pred_region
          %s1201 = smul.u32 32, %s22
          %p1202 = scmp.lt.s32.totalorder %s1201, 63
          %s1203 = scalar_select %p1202, %s1201, 63
          %s1204 = smul.addr %s1203, 4
          %s1205 = scalar_lea.vmem %s7, %s1204
        $region64: #{mnist_nn_forward.1} parent=59 // pred_fallthru
          _
      $region60: #{mnist_nn_forward.1} parent=5 // pred_fallthru
        _
    $region6: #{mnist_nn_forward.1} parent=1 // loop_footer
      %s20 = sadd.s32 1, %s16
    $region7: #{mnist_nn_forward.1} parent=1 // loop_footer_branch
      %15 = sbr.rel target = $region3
    $region8: #{mnist_nn_forward.1} parent=1 // loop_exit
      _
    %1206 = vsyncpa [#allocation3], 1
    %s1207 = scalar_lea.sflag [#allocation3], 1
    %1208 = vsyncpa %s1207, 1

</llo_original>
